<compile_context>
chip_gen: v5e
topology: v5e:2x2
jax: 0.10.0
libtpu: 0.0.40
codegen_flags: <defaults>
</compile_context>

<pallas_src>
import jax
import jax.numpy as jnp
from jax.experimental import pallas as pl
from jax.experimental.pallas import tpu as pltpu

EPS = 1e-5
LANES = 128
SUBLANES = 8
BR = 8192                      # streamed tile: 8192 rows x 128 lanes x 4 B = 4 MiB
NSPLIT = 2                     # pass-1 tile-axis split -> shardable on v7x's 2 TCs
FAST_MAX_ROWS = BR             # fused single-pass path if a channel fits one block
VMEM_LIMIT = 48 * 1024 * 1024  # explicit scoped-VMEM budget (<= v7x physical 64 MiB)
PASS1_INPUT_BUFFERS = 3        # deeper pipelining on the pass-1 input stream


def _cdiv(a, b):
    return -(-a // b)


def _maybe_buffered_spec(block_shape, index_map, nbuf):
    """BlockSpec with deeper pipelining where supported; plain BlockSpec otherwise."""
    try:
        return pl.BlockSpec(block_shape, index_map, pipeline_mode=pl.Buffered(nbuf))
    except Exception:  # pipeline_mode / Buffered unavailable -> default double buffering
        return pl.BlockSpec(block_shape, index_map)


# -------------------------------------------------------------------------------------
# Fast path: whole channel resident in VMEM -> one fused kernel (mean/var + normalize).
# -------------------------------------------------------------------------------------
def _make_fused_kernel(n_valid, n_pad):
    inv_n = 1.0 / float(n_valid)
    pad = float(n_pad)

    def fused_kernel(w_ref, b_ref, x_ref, o_ref):
        c = pl.program_id(0)
        x = x_ref[0]                                        # (rows, 128) f32
        s = jnp.sum(jnp.sum(x, axis=0, keepdims=True), axis=1, keepdims=True)
        mean = s * inv_n                                    # HBM zero pad does not bias the sum
        d = x - mean
        q = jnp.sum(jnp.sum(d * d, axis=0, keepdims=True), axis=1, keepdims=True)
        q = q - pad * mean * mean                           # drop the (0 - mean)^2 pad terms
        var = jnp.maximum(q * inv_n, 0.0)
        scale = w_ref[c] * jax.lax.rsqrt(var + EPS)
        o_ref[0] = d * scale + b_ref[c]                     # y = (x - mean)*scale + bias

    return fused_kernel


# -------------------------------------------------------------------------------------
# General path, pass 1: streamed shifted moments into a resident (8,128) accumulator.
# -------------------------------------------------------------------------------------
def _make_stats_kernel(t_sub, rows_total):
    def stats_kernel(k_ref, x_ref, sum_ref, sq_ref):
        c = pl.program_id(0)
        s = pl.program_id(1)
        t = pl.program_id(2)

        @pl.when(t == 0)
        def _():
            sum_ref[...] = jnp.zeros_like(sum_ref)
            sq_ref[...] = jnp.zeros_like(sq_ref)

        k = k_ref[c]
        # Valid rows in this tile; <= 0 for the clamped overhang tiles of the last split.
        lim = rows_total - (s * t_sub + t) * BR
        r_iota = jax.lax.broadcasted_iota(jnp.int32, (BR, LANES), 0)
        # Rows past the valid range (partial tail tile / overhang tiles) contribute 0.
        d = jnp.where(r_iota < lim, x_ref[0] - k, 0.0)
        dr = d.reshape(BR // SUBLANES, SUBLANES, LANES)      # vreg-aligned regroup
        sum_ref[0, 0] += jnp.sum(dr, axis=0)                 # VPU adds only
        sq_ref[0, 0] += jnp.sum(dr * dr, axis=0)

    return stats_kernel


# -------------------------------------------------------------------------------------
# General path, pass 2: y = x * scale[c] + shift[c]   (scale/shift are SMEM scalars).
# -------------------------------------------------------------------------------------
def _apply_kernel(scale_ref, shift_ref, x_ref, o_ref):
    c = pl.program_id(0)
    o_ref[...] = x_ref[...] * scale_ref[c] + shift_ref[c]


@jax.jit
def sync_batch_norm(x_nchw, weight, bias):
    """Training-mode SyncBatchNorm forward (single replica). x_nchw: (N, C, H, W)."""
    N, C, H, W = x_nchw.shape
    L = N * H * W

    # Channel-major flatten. For C == 1 (this module) this is a free reshape.
    if C == 1:
        x_cl = x_nchw.reshape(1, L).astype(jnp.float32)
    else:
        x_cl = jnp.transpose(x_nchw, (1, 0, 2, 3)).reshape(C, L).astype(jnp.float32)

    weight = weight.astype(jnp.float32).reshape(C)
    bias = bias.astype(jnp.float32).reshape(C)

    # Lane-dense packing (C, L) -> (C, rows, 128).  Only when L is not already a
    # multiple of 128 do we pay a (<= 127 element) zero-pad copy.
    rows = _cdiv(L, LANES)
    L128 = rows * LANES
    if L128 != L:
        x_cl = jnp.pad(x_cl, ((0, 0), (0, L128 - L)))
    x_3d = x_cl.reshape(C, rows, LANES)

    smem_spec = pl.BlockSpec(memory_space=pltpu.MemorySpace.SMEM)

    if rows <= FAST_MAX_ROWS:
        # ---- Fast path: whole channel in one VMEM block, single fused kernel. ----
        full_spec = pl.BlockSpec((1, rows, LANES), lambda c: (c, 0, 0))
        out_3d = pl.pallas_call(
            _make_fused_kernel(L, L128 - L),
            out_shape=jax.ShapeDtypeStruct((C, rows, LANES), jnp.float32),
            grid_spec=pltpu.PrefetchScalarGridSpec(
                num_scalar_prefetch=0,
                grid=(C,),
                in_specs=[smem_spec, smem_spec, full_spec],
                out_specs=full_spec,
            ),
            compiler_params=pltpu.CompilerParams(
                dimension_semantics=("parallel",),
                vmem_limit_bytes=VMEM_LIMIT),
        )(weight, bias, x_3d)
    else:
        # ---- General path: two streamed passes (rows > BR here, so T >= 2). ----
        T = _cdiv(rows, BR)
        T_sub = _cdiv(T, NSPLIT)
        inv_n = 1.0 / float(L)

        # Per-channel shift k ~ sample mean (exact for any k; a value near the mean
        # protects q/L - (s/L)^2 against cancellation).  Estimated from the first 128
        # elements: 512 B per channel, negligible for the large-L path.  If the data
        # is strongly ordered the protection merely weakens (result stays exact).
        k = jnp.mean(x_cl[:, :LANES], axis=1)

        x_stats_spec = _maybe_buffered_spec(
            (1, BR, LANES),
            lambda c, s, t: (c, jnp.minimum(s * T_sub + t, T - 1), 0),
            PASS1_INPUT_BUFFERS)
        acc_spec = pl.BlockSpec((1, 1, SUBLANES, LANES), lambda c, s, t: (c, s, 0, 0))

        part_sum, part_sq = pl.pallas_call(
            _make_stats_kernel(T_sub, rows),
            out_shape=(
                jax.ShapeDtypeStruct((C, NSPLIT, SUBLANES, LANES), jnp.float32),
                jax.ShapeDtypeStruct((C, NSPLIT, SUBLANES, LANES), jnp.float32),
            ),
            grid_spec=pltpu.PrefetchScalarGridSpec(
                num_scalar_prefetch=0,
                grid=(C, NSPLIT, T_sub),
                in_specs=[smem_spec, x_stats_spec],
                out_specs=[acc_spec, acc_spec],
            ),
            compiler_params=pltpu.CompilerParams(
                dimension_semantics=("parallel", "parallel", "arbitrary"),
                vmem_limit_bytes=VMEM_LIMIT),
        )(k, x_3d)

        # Tiny per-channel finalize in plain JAX.  Masked rows contributed exactly 0;
        # only the genuinely zero HBM lane pad (L % 128 != 0) needs the analytic fix.
        pad = float(L128 - L)
        S = jnp.sum(part_sum, axis=(1, 2, 3)) + pad * k
        Q = jnp.sum(part_sq, axis=(1, 2, 3)) - pad * k * k
        mean = k + S * inv_n
        var = jnp.maximum(Q * inv_n - (S * inv_n) ** 2, 0.0)
        scale = weight * jax.lax.rsqrt(var + EPS)
        shift = bias - mean * scale

        x_apply_spec = pl.BlockSpec((1, BR, LANES), lambda c, t: (c, t, 0))
        out_3d = pl.pallas_call(
            _apply_kernel,
            out_shape=jax.ShapeDtypeStruct((C, rows, LANES), jnp.float32),
            grid_spec=pltpu.PrefetchScalarGridSpec(
                num_scalar_prefetch=0,
                grid=(C, T),
                in_specs=[smem_spec, smem_spec, x_apply_spec],
                out_specs=x_apply_spec,
            ),
            compiler_params=pltpu.CompilerParams(
                dimension_semantics=("parallel", "parallel"),
                vmem_limit_bytes=VMEM_LIMIT),
        )(scale, shift, x_3d)

    out_cl = out_3d.reshape(C, L128)
    if L128 != L:
        out_cl = out_cl[:, :L]
    if C == 1:
        out = out_cl.reshape(N, 1, H, W)
    else:
        out = out_cl.reshape(C, N, H, W).transpose(1, 0, 2, 3)
    return out.astype(x_nchw.dtype)


if __name__ == "__main__":
    key = jax.random.PRNGKey(0)

    def reference(x, w, b):
        c = x.shape[1]
        mean = jnp.mean(x, axis=(0, 2, 3), keepdims=True)
        var = jnp.mean((x - mean) ** 2, axis=(0, 2, 3), keepdims=True)
        return ((x - mean) * jax.lax.rsqrt(var + EPS) * w.reshape(1, c, 1, 1)
                + b.reshape(1, c, 1, 1))

    # SyncBatchNorm(num_features=1) -> channel dim must be 1.  PyTorch defaults w=1, b=0.
    N, C, H, W = 2, 1, 16, 16
    k1, k2 = jax.random.split(key)
    weight = jnp.ones((C,), dtype=jnp.float32)
    bias = jnp.zeros((C,), dtype=jnp.float32)

    # Small shape (the shipped one): exercises the fused single-pass fast path.
    x_small = jax.random.normal(k1, (N, C, H, W), dtype=jnp.float32) * 2.0 + 0.5
    y_small = jax.block_until_ready(sync_batch_norm(x_small, weight, bias))
    err_small = float(jnp.max(jnp.abs(y_small - reference(x_small, weight, bias))))
    assert err_small < 5e-4, err_small

    # Larger shape: exercises the streamed two-pass path (split axis + partial tail tile).
    x_large = jax.random.normal(k2, (2, 1, 768, 768), dtype=jnp.float32) * 2.0 + 0.5
    y_large = jax.block_until_ready(sync_batch_norm(x_large, weight, bias))
    err_large = float(jnp.max(jnp.abs(y_large - reference(x_large, weight, bias))))
    assert err_large < 5e-3, err_large

    print("KERNEL_OK")
</pallas_src>

<mosaic_0001>
module attributes {stable_mosaic.version = 11 : i64} {
  func.func @fused_kernel(%arg0: i32, %arg1: memref<1xf32, #tpu.memory_space<smem>>, %arg2: memref<1xf32, #tpu.memory_space<smem>>, %arg3: memref<1x4x128xf32, #tpu.memory_space<vmem>>, %arg4: memref<1x4x128xf32, #tpu.memory_space<vmem>>) attributes {dimension_semantics = [#tpu.dimension_semantics<parallel>], iteration_bounds = array<i64: 1>, scalar_prefetch = 0 : i64, scratch_operands = 0 : i64, tpu.core_type = #tpu.core_type<tc>, window_params = [{transform_indices = @transform_0, window_bounds = array<i64: 1>}, {transform_indices = @transform_1, window_bounds = array<i64: 1>}, {transform_indices = @transform_2, window_bounds = array<i64: 1, 4, 128>}, {transform_indices = @transform_3, window_bounds = array<i64: 1, 4, 128>}]} {
    %c0 = arith.constant 0 : index
    %c0_0 = arith.constant 0 : index
    %c0_1 = arith.constant 0 : index
    %0 = vector.load %arg3[%c0, %c0_0, %c0_1] : memref<1x4x128xf32, #tpu.memory_space<vmem>>, vector<1x4x128xf32>
    %1 = vector.shape_cast %0 : vector<1x4x128xf32> to vector<4x128xf32>
    %cst = arith.constant dense<0.000000e+00> : vector<128xf32>
    %2 = vector.multi_reduction <add>, %1, %cst [0] : vector<4x128xf32> to vector<128xf32>
    %3 = vector.shape_cast %2 : vector<128xf32> to vector<1x128xf32>
    %cst_2 = arith.constant dense<0.000000e+00> : vector<1xf32>
    %4 = vector.multi_reduction <add>, %3, %cst_2 [1] : vector<1x128xf32> to vector<1xf32>
    %5 = vector.shape_cast %4 : vector<1xf32> to vector<1x1xf32>
    %cst_3 = arith.constant 0.001953125 : f32
    %6 = vector.broadcast %cst_3 : f32 to vector<1x1xf32>
    %7 = arith.mulf %5, %6 : vector<1x1xf32>
    %8 = vector.broadcast %7 : vector<1x1xf32> to vector<4x128xf32>
    %9 = arith.subf %1, %8 : vector<4x128xf32>
    %10 = arith.mulf %9, %9 : vector<4x128xf32>
    %cst_4 = arith.constant dense<0.000000e+00> : vector<128xf32>
    %11 = vector.multi_reduction <add>, %10, %cst_4 [0] : vector<4x128xf32> to vector<128xf32>
    %12 = vector.shape_cast %11 : vector<128xf32> to vector<1x128xf32>
    %cst_5 = arith.constant dense<0.000000e+00> : vector<1xf32>
    %13 = vector.multi_reduction <add>, %12, %cst_5 [1] : vector<1x128xf32> to vector<1xf32>
    %14 = vector.shape_cast %13 : vector<1xf32> to vector<1x1xf32>
    %cst_6 = arith.constant 0.000000e+00 : f32
    %15 = vector.broadcast %cst_6 : f32 to vector<1x1xf32>
    %16 = arith.mulf %15, %7 : vector<1x1xf32>
    %17 = arith.mulf %16, %7 : vector<1x1xf32>
    %18 = arith.subf %14, %17 : vector<1x1xf32>
    %cst_7 = arith.constant 0.001953125 : f32
    %19 = vector.broadcast %cst_7 : f32 to vector<1x1xf32>
    %20 = arith.mulf %18, %19 : vector<1x1xf32>
    %cst_8 = arith.constant 0.000000e+00 : f32
    %21 = vector.broadcast %cst_8 : f32 to vector<1x1xf32>
    %22 = arith.maximumf %20, %21 : vector<1x1xf32>
    %23 = arith.index_cast %arg0 : i32 to index
    %24 = memref.load %arg1[%23] : memref<1xf32, #tpu.memory_space<smem>>
    %cst_9 = arith.constant 9.99999974E-6 : f32
    %25 = vector.broadcast %cst_9 : f32 to vector<1x1xf32>
    %26 = arith.addf %22, %25 : vector<1x1xf32>
    %27 = math.rsqrt %26 : vector<1x1xf32>
    %28 = vector.broadcast %24 : f32 to vector<1x1xf32>
    %29 = arith.mulf %28, %27 : vector<1x1xf32>
    %30 = vector.broadcast %29 : vector<1x1xf32> to vector<4x128xf32>
    %31 = arith.mulf %9, %30 : vector<4x128xf32>
    %32 = arith.index_cast %arg0 : i32 to index
    %33 = memref.load %arg2[%32] : memref<1xf32, #tpu.memory_space<smem>>
    %34 = vector.broadcast %33 : f32 to vector<4x128xf32>
    %35 = arith.addf %31, %34 : vector<4x128xf32>
    %c0_10 = arith.constant 0 : index
    %c0_11 = arith.constant 0 : index
    %c0_12 = arith.constant 0 : index
    %36 = vector.load %arg4[%c0_10, %c0_11, %c0_12] : memref<1x4x128xf32, #tpu.memory_space<vmem>>, vector<1x4x128xf32>
    %37 = vector.shape_cast %36 : vector<1x4x128xf32> to vector<4x128xf32>
    %38 = vector.shape_cast %35 : vector<4x128xf32> to vector<1x4x128xf32>
    tpu.vector_store %arg4[%c0_10, %c0_11, %c0_12], %38 {strides = array<i32>} : memref<1x4x128xf32, #tpu.memory_space<vmem>>, vector<1x4x128xf32>,
    return
  }
  func.func @transform_0(%arg0: i32) -> i32 {
    %c0_i32 = arith.constant 0 : i32
    %c0_i32_0 = arith.constant 0 : i32
    return %c0_i32 : i32
  }
  func.func @transform_1(%arg0: i32) -> i32 {
    %c0_i32 = arith.constant 0 : i32
    %c0_i32_0 = arith.constant 0 : i32
    return %c0_i32 : i32
  }
  func.func @transform_2(%arg0: i32) -> (i32, i32, i32) {
    %c0_i32 = arith.constant 0 : i32
    %c0_i32_0 = arith.constant 0 : i32
    %c0_i32_1 = arith.constant 0 : i32
    return %arg0, %c0_i32, %c0_i32_0 : i32, i32, i32
  }
  func.func @transform_3(%arg0: i32) -> (i32, i32, i32) {
    %c0_i32 = arith.constant 0 : i32
    %c0_i32_0 = arith.constant 0 : i32
    %c0_i32_1 = arith.constant 0 : i32
    return %arg0, %c0_i32, %c0_i32_0 : i32, i32, i32
  }
}

</mosaic_0001>

<llo_original>
// kernel: sync_batch_norm.1
$region0: #{sync_batch_norm.1}
  #allocation0 [shape = 'u32[]', space=smem, size = 0x4, offset = 0x4, fixed_abs, tag = 'smem constant byte address 0x4 - core index']
  #allocation1 [shape = 'u32[72,128]{1,0:T(1,128)}', space=vmem, size = 0x9000, scoped, tag = 'internal scratch']
  #allocation2 [shape = 'f32[1]{0:T(128)S(6)}', space=smem, size = 0x200, scoped, tag = 'scoped memory for sync_batch_norm.1']
  #allocation3 [shape = 'f32[1]{0:T(128)S(6)}', space=smem, size = 0x200, scoped, tag = 'scoped memory for sync_batch_norm.1']
  %s0 = inlined_call_operand.<no memory space> [shape: f32[1], index: 0, kind: input, shape index: {}]
  %s1 = inlined_call_operand.<no memory space> [shape: f32[1], index: 1, kind: input, shape index: {}]
  %s2 = inlined_call_operand.vmem [shape: f32[1,4,128], index: 2, kind: input, shape index: {}]
  %s3 = inlined_call_operand.vmem [shape: f32[1,4,128], index: 3, kind: output, shape index: {}]
  %s4 = sld [smem:[#allocation0]]
  $region22: #{sync_batch_norm.1} parent=0
    _
  %s6 = ssub.s32 1, %s4
  %s7 = scalar_select 0, %s6, %s4
  %8 = sst [smem:[#allocation2]] %s0
  %9 = sst [smem:[#allocation3]] %s1
  // Predicated region
  $region2: #{sync_batch_norm.1} parent=0 // pred_check
    _
  $region3: #{sync_batch_norm.1} parent=0 // pred_check_branch
    %11 = sbr.rel (0) target = $region5
  $region4: #{sync_batch_norm.1} parent=0 // pred_region
    _
  $region5: #{sync_batch_norm.1} parent=0 // pred_fallthru
    _
  // Predicated region
  $region6: #{sync_batch_norm.1} parent=0 // pred_check
    _
  $region7: #{sync_batch_norm.1} parent=0 // pred_check_branch
    %13 = sbr.rel (0) target = $region9
  $region8: #{sync_batch_norm.1} parent=0 // pred_region
    _
  $region9: #{sync_batch_norm.1} parent=0 // pred_fallthru
    _
  // Predicated region
  $region10: #{sync_batch_norm.1} parent=0 // pred_check
    _
  $region11: #{sync_batch_norm.1} parent=0 // pred_check_branch
    %15 = sbr.rel (0) target = $region13
  $region12: #{sync_batch_norm.1} parent=0 // pred_region
    _
  $region13: #{sync_batch_norm.1} parent=0 // pred_fallthru
    _
  %v16 = vld [vmem:[%s2] sm:$0xf]
  %vm17 = vcmask 1043456
  %v18 = vsel %vm17, %v16, 0.0
  %v19 = vrot.slane %v18, 4
  %v20 = vadd.f32 %v18, %v19
  %v21 = vrot.slane %v20, 2
  %v22 = vadd.f32 %v20, %v21
  %v23 = vrot.slane %v22, 1
  %v24 = vadd.f32 %v22, %v23
  %25 = vadd.xlane.f32.xlu0 %v24
  %v26 = vpop.xlane.xlu0 %25
  %v27 = vmul.f32 %v26, 0.001953125
  %v28 = vsub.f32 %v16, %v27
  %v29 = vmul.f32 %v28, %v28
  %v30 = vsel %vm17, %v29, 0.0
  %v31 = vrot.slane %v30, 4
  %v32 = vadd.f32 %v30, %v31
  %v33 = vrot.slane %v32, 2
  %v34 = vadd.f32 %v32, %v33
  %v35 = vrot.slane %v34, 1
  %v36 = vadd.f32 %v34, %v35
  %37 = vadd.xlane.f32.xlu0 %v36
  %v38 = vpop.xlane.xlu0 %37
  %v39 = vmul.f32 %v27, 0.0
  %v40 = vmul.f32 %v39, %v27
  %v41 = vsub.f32 %v38, %v40
  %v42 = vmul.f32 %v41, 0.001953125
  %v43 = vmax.f32 %v42, 0.0
  %s44 = sld [smem:[#allocation2]]
  %v45 = vadd.f32 %v43, 1e-05
  %v46 = vrsqrt.pop %v45
  %v47 = vmul.f32 %v46, %v45
  %v48 = vmul.f32 %v47, %v46
  %v49 = vmul.f32 0.5, %v48
  %v50 = vsub.f32 1.5, %v49
  %v51 = vmul.f32 %v46, %v50
  %vm52 = vweird.f32 %v45
  %vm53 = vweird.f32 %v46
  %vm54 = vmor %vm52, %vm53
  %v55 = vsel %vm54, %v46, %v51
  %v56 = vstv %s44
  %v57 = vmul.f32 %v56, %v55
  %v58 = vmul.f32 %v28, %v57
  %s59 = sld [smem:[#allocation3]]
  %v60 = vstv %s59
  %v61 = vadd.f32 %v58, %v60
  %62 = vst [vmem:[%s3] sm:$0xf] %v61
  // Predicated region
  $region14: #{sync_batch_norm.1} parent=0 // pred_check
    _
  $region15: #{sync_batch_norm.1} parent=0 // pred_check_branch
    %64 = sbr.rel (0) target = $region17
  $region16: #{sync_batch_norm.1} parent=0 // pred_region
    _
  $region17: #{sync_batch_norm.1} parent=0 // pred_fallthru
    _
  // Predicated region
  $region18: #{sync_batch_norm.1} parent=0 // pred_check
    _
  $region19: #{sync_batch_norm.1} parent=0 // pred_check_branch
    %66 = sbr.rel (0) target = $region21
  $region20: #{sync_batch_norm.1} parent=0 // pred_region
    _
  $region21: #{sync_batch_norm.1} parent=0 // pred_fallthru
    _

</llo_original>
